<compile_context>
chip_gen: v7x
topology: tpu7x:2x2x1
jax: 0.10.0
libtpu: 0.0.40
codegen_flags: <defaults>
</compile_context>

<pallas_src>
import functools

import jax
import jax.numpy as jnp
from jax.experimental import pallas as pl
from jax.experimental.pallas import tpu as pltpu


def _round_up(x, m):
    return ((x + m - 1) // m) * m


def _vmem_capacity_bytes():
    try:
        return int(pltpu.get_tpu_info().vmem_capacity_bytes)
    except Exception:
        return 64 * 1024 * 1024   # conservative default = v7x per-TensorCore VMEM


def _discriminator_kernel(x_ref, w1_ref, b1_ref, w2_ref, b2_ref, o_ref,
                          *, leaky, activation, negative_slope):
    # Cast x to the weights' compute dtype in-kernel: the convert is VPU filler hidden
    # under the x-tile DMA instead of a separate un-hidden XLA pass over x in HBM.
    x = x_ref[...].astype(w1_ref.dtype)

    # fc1 on the MXU with f32 accumulation; bias add + activation in f32 on the VPU.
    h = jnp.dot(x, w1_ref[...], preferred_element_type=jnp.float32)
    h = h + b1_ref[...]

    # ReLU / LeakyReLU (torch.nn.LeakyReLU default negative_slope = 0.01).
    if leaky:
        r = jnp.where(h > 0, h, negative_slope * h)
    else:
        r = jnp.maximum(h, 0.0)

    # fc2: feed the MXU in the weights' dtype (bf16 when enabled), accumulate in f32.
    out = jnp.dot(r.astype(w2_ref.dtype), w2_ref[...],
                  preferred_element_type=jnp.float32)
    out = out + b2_ref[...]

    if activation == "sigmoid":
        out = jax.nn.sigmoid(out)      # EUP exp/recip: free filler under DMA/MXU slack
    elif activation == "tanh":
        out = jnp.tanh(out)
    # else: no final activation (matches the torch module).

    o_ref[...] = out.astype(o_ref.dtype)


def _choose_block_b(batch, in_size, hidden, out_size,
                    x_bytes, cdt_bytes, out_bytes, vmem_capacity, max_block=512):
    """Pick a batch tile from the real per-row VMEM footprint and the chip's VMEM."""
    align = 16 if cdt_bytes < 4 else 8     # bf16 packs 16 rows per sublane-packed vreg
    if batch <= align:
        blk = align
    else:
        # >= 4 grid steps when the batch allows: v7x shards the "parallel" axis across
        # its 2 TensorCores, leaving >= 2 steps per core for DMA/compute overlap.
        blk = min(max(align, _round_up(pl.cdiv(batch, 4), align)), max_block)

    # VMEM-aware cap: double-buffered x/out tiles plus ~3 live f32 (blk, hidden)
    # intermediates must fit next to the resident weights in ~half of VMEM.
    weight_bytes = ((in_size * hidden + hidden * out_size) * cdt_bytes
                    + 2 * (hidden + out_size) * 4)
    budget = vmem_capacity // 2 - 2 * weight_bytes
    per_row = (2 * in_size * x_bytes + in_size * cdt_bytes
               + 3 * hidden * 4 + 2 * out_size * 4 + 2 * out_size * out_bytes)
    if budget >= per_row * align:
        blk = min(blk, max(align, (budget // per_row) // align * align))
    else:
        blk = align   # weights dominate VMEM; see TODO about K-tiling fc1.
    return blk


# Whether this jax build accepts pipeline_mode=pl.Buffered(1) on pallas_call BlockSpecs
# (single-buffered resident weights).  None = not probed yet.
_SINGLE_BUFFER_WEIGHTS_OK = None


def _build_call(kernel, B, in_size, hidden, out_size, block_b, out_dtype,
                vmem_limit, cost, single_buffer_weights):
    resident_kw = dict(pipeline_mode=pl.Buffered(1)) if single_buffer_weights else {}
    grid = (pl.cdiv(B, block_b),)
    return pl.pallas_call(
        kernel,
        out_shape=jax.ShapeDtypeStruct((B, out_size), out_dtype),
        grid_spec=pltpu.PrefetchScalarGridSpec(
            num_scalar_prefetch=0,
            grid=grid,
            in_specs=[
                # x tiled along batch; weights/biases resident (constant block index).
                pl.BlockSpec((block_b, in_size), lambda i: (i, 0)),
                pl.BlockSpec((in_size, hidden), lambda i: (0, 0), **resident_kw),
                pl.BlockSpec((1, hidden), lambda i: (0, 0), **resident_kw),
                pl.BlockSpec((hidden, out_size), lambda i: (0, 0), **resident_kw),
                pl.BlockSpec((1, out_size), lambda i: (0, 0), **resident_kw),
            ],
            out_specs=pl.BlockSpec((block_b, out_size), lambda i: (i, 0)),
        ),
        compiler_params=pltpu.CompilerParams(
            dimension_semantics=("parallel",),
            vmem_limit_bytes=vmem_limit,
        ),
        cost_estimate=cost,
    )


def discriminator_fcn(x, w1, b1, w2, b2, *, leaky=False, activation="sigmoid",
                      block_b=None, use_bf16=True, out_dtype=None):
    """Fused forward pass of DiscriminatorFCN.

    x : (B, input_size)
    w1: (input_size, hidden_size)   b1: (hidden_size,)
    w2: (hidden_size, output_size)  b2: (output_size,)

    Callers reusing the same parameters across many calls should pre-cast w1/w2 to bf16
    once and pass them in; the wrapper only casts when dtypes differ.
    """
    global _SINGLE_BUFFER_WEIGHTS_OK

    B, in_size = x.shape
    hidden = w1.shape[1]
    out_size = w2.shape[1]
    if out_dtype is None:
        out_dtype = x.dtype

    compute_dtype = jnp.bfloat16 if use_bf16 else x.dtype
    x_bytes = jnp.dtype(x.dtype).itemsize
    cdt_bytes = jnp.dtype(compute_dtype).itemsize
    out_bytes = jnp.dtype(out_dtype).itemsize

    vmem_cap = _vmem_capacity_bytes()
    if block_b is None:
        block_b = _choose_block_b(B, in_size, hidden, out_size,
                                  x_bytes, cdt_bytes, out_bytes, vmem_cap)
    else:
        block_b = max(8, _round_up(block_b, 16 if cdt_bytes < 4 else 8))

    # Resident operands: cast weights to the compute dtype (skipped if already cast by
    # the caller); biases stay f32 and broadcast inside the kernel (2-D for TPU layout).
    w1c = w1 if w1.dtype == compute_dtype else w1.astype(compute_dtype)
    w2c = w2 if w2.dtype == compute_dtype else w2.astype(compute_dtype)
    b1_2d = b1.astype(jnp.float32).reshape(1, hidden)
    b2_2d = b2.astype(jnp.float32).reshape(1, out_size)

    kernel = functools.partial(
        _discriminator_kernel,
        leaky=leaky,
        activation=activation,
        negative_slope=0.01,
    )

    flops = 2 * B * (in_size * hidden + hidden * out_size)
    transcendentals = B * out_size if activation in ("sigmoid", "tanh") else 0
    bytes_accessed = (B * in_size * x_bytes
                      + (in_size * hidden + hidden * out_size) * cdt_bytes
                      + (hidden + out_size) * 4
                      + B * out_size * out_bytes)
    cost = pl.CostEstimate(flops=int(flops),
                           transcendentals=int(transcendentals),
                           bytes_accessed=int(bytes_accessed))

    # VMEM budget: double-buffered x/out tiles, resident weights (<= 2 buffers covers the
    # fallback path), biases, live f32 intermediates, + 8 MiB slack; clamp to cap - 8 MiB.
    vmem_needed = (2 * block_b * in_size * x_bytes
                   + 2 * block_b * out_size * out_bytes
                   + 2 * (in_size * hidden + hidden * out_size) * cdt_bytes
                   + 4 * (hidden + out_size) * 4
                   + block_b * (in_size * cdt_bytes + 3 * hidden * 4 + 2 * out_size * 4))
    vmem_limit = int(min(max(vmem_needed + (8 << 20), 16 << 20), vmem_cap - (8 << 20)))

    args = (x, w1c, b1_2d, w2c, b2_2d)
    build = functools.partial(_build_call, kernel, B, in_size, hidden, out_size,
                              block_b, out_dtype, vmem_limit, cost)

    if _SINGLE_BUFFER_WEIGHTS_OK in (None, True):
        try:
            out = build(single_buffer_weights=True)(*args)
            _SINGLE_BUFFER_WEIGHTS_OK = True
            return out
        except Exception:
            # pipeline_mode=pl.Buffered(1) not supported by this build's pallas_call
            # pipelining; fall back to default double-buffered resident weights.
            _SINGLE_BUFFER_WEIGHTS_OK = False
    return build(single_buffer_weights=False)(*args)


def reference_forward(x, w1, b1, w2, b2, *, leaky=False, activation="sigmoid"):
    h = x @ w1 + b1
    r = jnp.where(h > 0, h, 0.01 * h) if leaky else jnp.maximum(h, 0.0)
    out = r @ w2 + b2
    if activation == "sigmoid":
        out = jax.nn.sigmoid(out)
    elif activation == "tanh":
        out = jnp.tanh(out)
    return out


if __name__ == "__main__":
    # Small shapes consistent with the module: DiscriminatorFCN(16, 32, 8), batch = 16.
    B, input_size, hidden_size, output_size = 16, 16, 32, 8

    key = jax.random.PRNGKey(0)
    kx, kw1, kb1, kw2, kb2 = jax.random.split(key, 5)

    x = jax.random.normal(kx, (B, input_size), dtype=jnp.float32)
    bound1 = 1.0 / (input_size ** 0.5)
    bound2 = 1.0 / (hidden_size ** 0.5)
    w1 = jax.random.uniform(kw1, (input_size, hidden_size), jnp.float32, -bound1, bound1)
    b1 = jax.random.uniform(kb1, (hidden_size,), jnp.float32, -bound1, bound1)
    w2 = jax.random.uniform(kw2, (hidden_size, output_size), jnp.float32, -bound2, bound2)
    b2 = jax.random.uniform(kb2, (output_size,), jnp.float32, -bound2, bound2)

    ref = reference_forward(x, w1, b1, w2, b2, leaky=False, activation="sigmoid")

    # 1) f32 path: exact vs reference.
    out_f32 = jax.block_until_ready(
        discriminator_fcn(x, w1, b1, w2, b2, leaky=False, activation="sigmoid",
                          use_bf16=False))
    assert out_f32.shape == (B, output_size)
    assert jnp.allclose(out_f32, ref, atol=1e-5, rtol=1e-5), "f32 mismatch vs reference"

    # 2) default path: bf16 MXU operands (in-kernel x cast), f32 accumulate/activations.
    out_bf16 = jax.block_until_ready(
        discriminator_fcn(x, w1, b1, w2, b2, leaky=False, activation="sigmoid"))
    assert jnp.allclose(out_bf16, ref, atol=2e-2, rtol=2e-2), "bf16 mismatch vs reference"

    # 3) ragged batch (no wrapper pad/slice) + LeakyReLU + tanh head.
    xr = jax.random.normal(jax.random.PRNGKey(1), (10, input_size), dtype=jnp.float32)
    out_r = jax.block_until_ready(
        discriminator_fcn(xr, w1, b1, w2, b2, leaky=True, activation="tanh",
                          use_bf16=False))
    ref_r = reference_forward(xr, w1, b1, w2, b2, leaky=True, activation="tanh")
    assert out_r.shape == (10, output_size)
    assert jnp.allclose(out_r, ref_r, atol=1e-5, rtol=1e-5), "ragged/leaky/tanh mismatch"

    # 4) pre-cast (cached) bf16 weights + bf16 output writeback.
    w1_bf16 = w1.astype(jnp.bfloat16)
    w2_bf16 = w2.astype(jnp.bfloat16)
    out_bo = jax.block_until_ready(
        discriminator_fcn(x, w1_bf16, b1, w2_bf16, b2, leaky=False,
                          activation="sigmoid", out_dtype=jnp.bfloat16))
    assert out_bo.dtype == jnp.bfloat16
    assert jnp.allclose(out_bo.astype(jnp.float32), ref, atol=3e-2, rtol=3e-2), \
        "bf16-output mismatch vs reference"

    print("KERNEL_OK")
</pallas_src>

<mosaic_0001>
module attributes {stable_mosaic.version = 11 : i64} {
  func.func @_discriminator_kernel(%arg0: i32, %arg1: memref<8x16xf32, #tpu.memory_space<vmem>>, %arg2: memref<16x32xf32, #tpu.memory_space<vmem>>, %arg3: memref<1x32xf32, #tpu.memory_space<vmem>>, %arg4: memref<32x8xf32, #tpu.memory_space<vmem>>, %arg5: memref<1x8xf32, #tpu.memory_space<vmem>>, %arg6: memref<8x8xf32, #tpu.memory_space<vmem>>) attributes {dimension_semantics = [#tpu.dimension_semantics<parallel>], iteration_bounds = array<i64: 2>, scalar_prefetch = 0 : i64, scratch_operands = 0 : i64, tpu.core_type = #tpu.core_type<tc>, window_params = [{transform_indices = @transform_0, window_bounds = array<i64: 8, 16>}, {pipeline_mode = #tpu.pipeline_mode<synchronous>, transform_indices = @transform_1, window_bounds = array<i64: 16, 32>}, {pipeline_mode = #tpu.pipeline_mode<synchronous>, transform_indices = @transform_2, window_bounds = array<i64: 1, 32>}, {pipeline_mode = #tpu.pipeline_mode<synchronous>, transform_indices = @transform_3, window_bounds = array<i64: 32, 8>}, {pipeline_mode = #tpu.pipeline_mode<synchronous>, transform_indices = @transform_4, window_bounds = array<i64: 1, 8>}, {transform_indices = @transform_5, window_bounds = array<i64: 8, 8>}]} {
    %c0 = arith.constant 0 : index
    %c0_0 = arith.constant 0 : index
    %0 = vector.load %arg1[%c0, %c0_0] : memref<8x16xf32, #tpu.memory_space<vmem>>, vector<8x16xf32>
    %c0_1 = arith.constant 0 : index
    %c0_2 = arith.constant 0 : index
    %1 = vector.load %arg2[%c0_1, %c0_2] : memref<16x32xf32, #tpu.memory_space<vmem>>, vector<16x32xf32>
    %cst = arith.constant dense<0.000000e+00> : vector<8x32xf32>
    %2 = tpu.matmul %0, %1, %cst {dimension_numbers = #tpu.dot_dimension_numbers<[1], [0], [0], [1], [0, 0, 1, 1], [], []>} : vector<8x16xf32>, vector<16x32xf32>, vector<8x32xf32> -> vector<8x32xf32>
    %c0_3 = arith.constant 0 : index
    %c0_4 = arith.constant 0 : index
    %3 = vector.load %arg3[%c0_3, %c0_4] : memref<1x32xf32, #tpu.memory_space<vmem>>, vector<1x32xf32>
    %4 = vector.broadcast %3 : vector<1x32xf32> to vector<8x32xf32>
    %5 = arith.addf %2, %4 : vector<8x32xf32>
    %cst_5 = arith.constant 0.000000e+00 : f32
    %6 = vector.broadcast %cst_5 : f32 to vector<8x32xf32>
    %7 = arith.maximumf %5, %6 : vector<8x32xf32>
    %c0_6 = arith.constant 0 : index
    %c0_7 = arith.constant 0 : index
    %8 = vector.load %arg4[%c0_6, %c0_7] : memref<32x8xf32, #tpu.memory_space<vmem>>, vector<32x8xf32>
    %cst_8 = arith.constant dense<0.000000e+00> : vector<8x8xf32>
    %9 = tpu.matmul %7, %8, %cst_8 {dimension_numbers = #tpu.dot_dimension_numbers<[1], [0], [0], [1], [0, 0, 1, 1], [], []>} : vector<8x32xf32>, vector<32x8xf32>, vector<8x8xf32> -> vector<8x8xf32>
    %c0_9 = arith.constant 0 : index
    %c0_10 = arith.constant 0 : index
    %10 = vector.load %arg5[%c0_9, %c0_10] : memref<1x8xf32, #tpu.memory_space<vmem>>, vector<1x8xf32>
    %11 = vector.broadcast %10 : vector<1x8xf32> to vector<8x8xf32>
    %12 = arith.addf %9, %11 : vector<8x8xf32>
    %13 = arith.negf %12 : vector<8x8xf32>
    %14 = math.exp %13 : vector<8x8xf32>
    %cst_11 = arith.constant 1.000000e+00 : f32
    %15 = vector.broadcast %cst_11 : f32 to vector<8x8xf32>
    %16 = arith.addf %15, %14 : vector<8x8xf32>
    %17 = arith.divf %15, %16 : vector<8x8xf32>
    %c0_12 = arith.constant 0 : index
    %c0_13 = arith.constant 0 : index
    %18 = vector.load %arg6[%c0_12, %c0_13] : memref<8x8xf32, #tpu.memory_space<vmem>>, vector<8x8xf32>
    tpu.vector_store %arg6[%c0_12, %c0_13], %17 {strides = array<i32>} : memref<8x8xf32, #tpu.memory_space<vmem>>, vector<8x8xf32>,
    return
  }
  func.func @transform_0(%arg0: i32) -> (i32, i32) {
    %c0_i32 = arith.constant 0 : i32
    %c0_i32_0 = arith.constant 0 : i32
    return %arg0, %c0_i32 : i32, i32
  }
  func.func @transform_1(%arg0: i32) -> (i32, i32) {
    %c0_i32 = arith.constant 0 : i32
    %c0_i32_0 = arith.constant 0 : i32
    %c0_i32_1 = arith.constant 0 : i32
    return %c0_i32, %c0_i32_0 : i32, i32
  }
  func.func @transform_2(%arg0: i32) -> (i32, i32) {
    %c0_i32 = arith.constant 0 : i32
    %c0_i32_0 = arith.constant 0 : i32
    %c0_i32_1 = arith.constant 0 : i32
    return %c0_i32, %c0_i32_0 : i32, i32
  }
  func.func @transform_3(%arg0: i32) -> (i32, i32) {
    %c0_i32 = arith.constant 0 : i32
    %c0_i32_0 = arith.constant 0 : i32
    %c0_i32_1 = arith.constant 0 : i32
    return %c0_i32, %c0_i32_0 : i32, i32
  }
  func.func @transform_4(%arg0: i32) -> (i32, i32) {
    %c0_i32 = arith.constant 0 : i32
    %c0_i32_0 = arith.constant 0 : i32
    %c0_i32_1 = arith.constant 0 : i32
    return %c0_i32, %c0_i32_0 : i32, i32
  }
  func.func @transform_5(%arg0: i32) -> (i32, i32) {
    %c0_i32 = arith.constant 0 : i32
    %c0_i32_0 = arith.constant 0 : i32
    return %arg0, %c0_i32 : i32, i32
  }
}

module attributes {stable_mosaic.version = 11 : i64} {
  func.func @_discriminator_kernel(%arg0: i32, %arg1: memref<8x16xf32, #tpu.memory_space<vmem>>, %arg2: memref<16x32xf32, #tpu.memory_space<vmem>>, %arg3: memref<1x32xf32, #tpu.memory_space<vmem>>, %arg4: memref<32x8xf32, #tpu.memory_space<vmem>>, %arg5: memref<1x8xf32, #tpu.memory_space<vmem>>, %arg6: memref<8x8xf32, #tpu.memory_space<vmem>>) attributes {dimension_semantics = [#tpu.dimension_semantics<parallel>], iteration_bounds = array<i64: 2>, scalar_prefetch = 0 : i64, scratch_operands = 0 : i64, tpu.core_type = #tpu.core_type<tc>, window_params = [{transform_indices = @transform_0, window_bounds = array<i64: 8, 16>}, {pipeline_mode = #tpu.pipeline_mode<synchronous>, transform_indices = @transform_1, window_bounds = array<i64: 16, 32>}, {pipeline_mode = #tpu.pipeline_mode<synchronous>, transform_indices = @transform_2, window_bounds = array<i64: 1, 32>}, {pipeline_mode = #tpu.pipeline_mode<synchronous>, transform_indices = @transform_3, window_bounds = array<i64: 32, 8>}, {pipeline_mode = #tpu.pipeline_mode<synchronous>, transform_indices = @transform_4, window_bounds = array<i64: 1, 8>}, {transform_indices = @transform_5, window_bounds = array<i64: 8, 8>}]} {
    %c0 = arith.constant 0 : index
    %c0_0 = arith.constant 0 : index
    %0 = vector.load %arg1[%c0, %c0_0] : memref<8x16xf32, #tpu.memory_space<vmem>>, vector<8x16xf32>
    %c0_1 = arith.constant 0 : index
    %c0_2 = arith.constant 0 : index
    %1 = vector.load %arg2[%c0_1, %c0_2] : memref<16x32xf32, #tpu.memory_space<vmem>>, vector<16x32xf32>
    %cst = arith.constant dense<0.000000e+00> : vector<8x32xf32>
    %2 = tpu.matmul %0, %1, %cst {dimension_numbers = #tpu.dot_dimension_numbers<[1], [0], [0], [1], [0, 0, 1, 1], [], []>} : vector<8x16xf32>, vector<16x32xf32>, vector<8x32xf32> -> vector<8x32xf32>
    %c0_3 = arith.constant 0 : index
    %c0_4 = arith.constant 0 : index
    %3 = vector.load %arg3[%c0_3, %c0_4] : memref<1x32xf32, #tpu.memory_space<vmem>>, vector<1x32xf32>
    %4 = vector.broadcast %3 : vector<1x32xf32> to vector<8x32xf32>
    %5 = arith.addf %2, %4 : vector<8x32xf32>
    %cst_5 = arith.constant 0.000000e+00 : f32
    %6 = vector.broadcast %cst_5 : f32 to vector<8x32xf32>
    %7 = arith.maximumf %5, %6 : vector<8x32xf32>
    %c0_6 = arith.constant 0 : index
    %c0_7 = arith.constant 0 : index
    %8 = vector.load %arg4[%c0_6, %c0_7] : memref<32x8xf32, #tpu.memory_space<vmem>>, vector<32x8xf32>
    %cst_8 = arith.constant dense<0.000000e+00> : vector<8x8xf32>
    %9 = tpu.matmul %7, %8, %cst_8 {dimension_numbers = #tpu.dot_dimension_numbers<[1], [0], [0], [1], [0, 0, 1, 1], [], []>} : vector<8x32xf32>, vector<32x8xf32>, vector<8x8xf32> -> vector<8x8xf32>
    %c0_9 = arith.constant 0 : index
    %c0_10 = arith.constant 0 : index
    %10 = vector.load %arg5[%c0_9, %c0_10] : memref<1x8xf32, #tpu.memory_space<vmem>>, vector<1x8xf32>
    %11 = vector.broadcast %10 : vector<1x8xf32> to vector<8x8xf32>
    %12 = arith.addf %9, %11 : vector<8x8xf32>
    %13 = arith.negf %12 : vector<8x8xf32>
    %14 = math.exp %13 : vector<8x8xf32>
    %cst_11 = arith.constant 1.000000e+00 : f32
    %15 = vector.broadcast %cst_11 : f32 to vector<8x8xf32>
    %16 = arith.addf %15, %14 : vector<8x8xf32>
    %17 = arith.divf %15, %16 : vector<8x8xf32>
    %c0_12 = arith.constant 0 : index
    %c0_13 = arith.constant 0 : index
    %18 = vector.load %arg6[%c0_12, %c0_13] : memref<8x8xf32, #tpu.memory_space<vmem>>, vector<8x8xf32>
    tpu.vector_store %arg6[%c0_12, %c0_13], %17 {strides = array<i32>} : memref<8x8xf32, #tpu.memory_space<vmem>>, vector<8x8xf32>,
    return
  }
  func.func @transform_0(%arg0: i32) -> (i32, i32) {
    %c0_i32 = arith.constant 0 : i32
    %c0_i32_0 = arith.constant 0 : i32
    return %arg0, %c0_i32 : i32, i32
  }
  func.func @transform_1(%arg0: i32) -> (i32, i32) {
    %c0_i32 = arith.constant 0 : i32
    %c0_i32_0 = arith.constant 0 : i32
    %c0_i32_1 = arith.constant 0 : i32
    return %c0_i32, %c0_i32_0 : i32, i32
  }
  func.func @transform_2(%arg0: i32) -> (i32, i32) {
    %c0_i32 = arith.constant 0 : i32
    %c0_i32_0 = arith.constant 0 : i32
    %c0_i32_1 = arith.constant 0 : i32
    return %c0_i32, %c0_i32_0 : i32, i32
  }
  func.func @transform_3(%arg0: i32) -> (i32, i32) {
    %c0_i32 = arith.constant 0 : i32
    %c0_i32_0 = arith.constant 0 : i32
    %c0_i32_1 = arith.constant 0 : i32
    return %c0_i32, %c0_i32_0 : i32, i32
  }
  func.func @transform_4(%arg0: i32) -> (i32, i32) {
    %c0_i32 = arith.constant 0 : i32
    %c0_i32_0 = arith.constant 0 : i32
    %c0_i32_1 = arith.constant 0 : i32
    return %c0_i32, %c0_i32_0 : i32, i32
  }
  func.func @transform_5(%arg0: i32) -> (i32, i32) {
    %c0_i32 = arith.constant 0 : i32
    %c0_i32_0 = arith.constant 0 : i32
    return %arg0, %c0_i32 : i32, i32
  }
}

</mosaic_0001>

<llo_original>
// kernel: tpu_custom_call.1
$region0: #{tpu_custom_call.1}
  #allocation0 [shape = 'u32[]', space=smem, size = 0x4, offset = 0x4, fixed_abs, tag = 'smem constant byte address 0x4 - core index']
  #allocation1 [shape = 'u32[144,128]{1,0:T(1,128)}', space=vmem, size = 0x12000, scoped, tag = 'internal scratch']
  %s0 = inlined_call_operand.vmem [shape: f32[16,16], index: 0, kind: input, shape index: {}]
  %s1 = inlined_call_operand.vmem [shape: f32[16,32], index: 1, kind: input, shape index: {}]
  %s2 = inlined_call_operand.vmem [shape: f32[1,32], index: 2, kind: input, shape index: {}]
  %s3 = inlined_call_operand.vmem [shape: f32[32,8], index: 3, kind: input, shape index: {}]
  %s4 = inlined_call_operand.vmem [shape: f32[1,8], index: 4, kind: input, shape index: {}]
  %s5 = inlined_call_operand.vmem [shape: f32[16,8], index: 5, kind: output, shape index: {}]
  %s6 = sld [smem:[#allocation0]]
  $region53: #{tpu_custom_call.1} parent=0
    _
  %s8 = ssub.s32 1, %s6
  %s9 = scalar_select 0, %s8, %s6
  loop: start=0, step=1, limit=4
  $region2: #{tpu_custom_call.1} parent=0 // loop_pre_header
    _
  $region3: #{tpu_custom_call.1} parent=0 // loop_header
    %s11 = sphi 0, %s15
    %p12 = scmp.ge.s32.totalorder %s11, 4
    %s21 = sphi 0, %s23
    %s24 = sphi 0, %s21
    %s25 = sphi 0, %s24
    %s41 = sphi 0, %s25
    %s45 = sphi 0, %s45
    %s47 = sphi 0, %s45
    %s48 = sphi 0, %s47
    %s62 = sphi 0, %s48
    %s66 = sphi 0, %s66
    %s68 = sphi 0, %s66
    %s69 = sphi 0, %s68
    %s83 = sphi 0, %s69
    %s87 = sphi 0, %s87
    %s89 = sphi 0, %s87
    %s90 = sphi 0, %s89
    %s104 = sphi 0, %s90
    %s108 = sphi 0, %s108
    %s110 = sphi 0, %s108
    %s111 = sphi 0, %s110
    %s125 = sphi 0, %s111
    %s131 = sphi 0, %s133
    %s134 = sphi 0, %s131
    %s135 = sphi 0, %s134
    %s151 = sphi 0, %s135
  $region4: #{tpu_custom_call.1} parent=0 // loop_header_branch
    %14 = sbr.rel (%p12) target = $region8
  $region5: #{tpu_custom_call.1} parent=0 // loop_body
    %s16 = ssub.s32 %s11, 1
    %s17 = ssub.s32 %s11, 2
    %s18 = sadd.s32 %s11, 1
    %s19 = ssub.s32 %s11, %s18
    %p20 = scmp.eq.s32.totalorder %s19, 0
    %s22 = sadd.s32 %s21, 1
    %s23 = scalar_select %p20, %s21, %s22
    %p26 = pneg %p20
    %p27 = scmp.eq.s32.totalorder %s11, 1
    %p28 = por %p26, %p27
    %p29 = scmp.ne.s32.totalorder %s21, %s24
    %p30 = scmp.eq.s32.totalorder %s11, 0
    %p31 = por %p29, %p30
    %p32 = scmp.ne.s32.totalorder %s21, %s24
    %p33 = scmp.eq.s32.totalorder %s16, 1
    %p34 = por %p32, %p33
    %p35 = scmp.ne.s32.totalorder %s24, %s25
    %p36 = scmp.eq.s32.totalorder %s16, 0
    %p37 = por %p35, %p36
    %p38 = scmp.ne.s32.totalorder %s24, %s25
    %p39 = scmp.eq.s32.totalorder %s17, 1
    %p40 = por %p38, %p39
    %p42 = scmp.ne.s32.totalorder %s25, %s41
    %p43 = scmp.eq.s32.totalorder %s17, 0
    %p44 = por %p42, %p43
    %s46 = sadd.s32 %s45, 1
    %p49 = scmp.eq.s32.totalorder %s11, 1
    %p50 = scmp.ne.s32.totalorder %s45, %s47
    %p51 = scmp.eq.s32.totalorder %s11, 0
    %p52 = por %p50, %p51
    %p53 = scmp.ne.s32.totalorder %s45, %s47
    %p54 = scmp.eq.s32.totalorder %s16, 1
    %p55 = por %p53, %p54
    %p56 = scmp.ne.s32.totalorder %s47, %s48
    %p57 = scmp.eq.s32.totalorder %s16, 0
    %p58 = por %p56, %p57
    %p59 = scmp.ne.s32.totalorder %s47, %s48
    %p60 = scmp.eq.s32.totalorder %s17, 1
    %p61 = por %p59, %p60
    %p63 = scmp.ne.s32.totalorder %s48, %s62
    %p64 = scmp.eq.s32.totalorder %s17, 0
    %p65 = por %p63, %p64
    %s67 = sadd.s32 %s66, 1
    %p70 = scmp.eq.s32.totalorder %s11, 1
    %p71 = scmp.ne.s32.totalorder %s66, %s68
    %p72 = scmp.eq.s32.totalorder %s11, 0
    %p73 = por %p71, %p72
    %p74 = scmp.ne.s32.totalorder %s66, %s68
    %p75 = scmp.eq.s32.totalorder %s16, 1
    %p76 = por %p74, %p75
    %p77 = scmp.ne.s32.totalorder %s68, %s69
    %p78 = scmp.eq.s32.totalorder %s16, 0
    %p79 = por %p77, %p78
    %p80 = scmp.ne.s32.totalorder %s68, %s69
    %p81 = scmp.eq.s32.totalorder %s17, 1
    %p82 = por %p80, %p81
    %p84 = scmp.ne.s32.totalorder %s69, %s83
    %p85 = scmp.eq.s32.totalorder %s17, 0
    %p86 = por %p84, %p85
    %s88 = sadd.s32 %s87, 1
    %p91 = scmp.eq.s32.totalorder %s11, 1
    %p92 = scmp.ne.s32.totalorder %s87, %s89
    %p93 = scmp.eq.s32.totalorder %s11, 0
    %p94 = por %p92, %p93
    %p95 = scmp.ne.s32.totalorder %s87, %s89
    %p96 = scmp.eq.s32.totalorder %s16, 1
    %p97 = por %p95, %p96
    %p98 = scmp.ne.s32.totalorder %s89, %s90
    %p99 = scmp.eq.s32.totalorder %s16, 0
    %p100 = por %p98, %p99
    %p101 = scmp.ne.s32.totalorder %s89, %s90
    %p102 = scmp.eq.s32.totalorder %s17, 1
    %p103 = por %p101, %p102
    %p105 = scmp.ne.s32.totalorder %s90, %s104
    %p106 = scmp.eq.s32.totalorder %s17, 0
    %p107 = por %p105, %p106
    %s109 = sadd.s32 %s108, 1
    %p112 = scmp.eq.s32.totalorder %s11, 1
    %p113 = scmp.ne.s32.totalorder %s108, %s110
    %p114 = scmp.eq.s32.totalorder %s11, 0
    %p115 = por %p113, %p114
    %p116 = scmp.ne.s32.totalorder %s108, %s110
    %p117 = scmp.eq.s32.totalorder %s16, 1
    %p118 = por %p116, %p117
    %p119 = scmp.ne.s32.totalorder %s110, %s111
    %p120 = scmp.eq.s32.totalorder %s16, 0
    %p121 = por %p119, %p120
    %p122 = scmp.ne.s32.totalorder %s110, %s111
    %p123 = scmp.eq.s32.totalorder %s17, 1
    %p124 = por %p122, %p123
    %p126 = scmp.ne.s32.totalorder %s111, %s125
    %p127 = scmp.eq.s32.totalorder %s17, 0
    %p128 = por %p126, %p127
    %s129 = ssub.s32 %s11, %s18
    %p130 = scmp.eq.s32.totalorder %s129, 0
    %s132 = sadd.s32 %s131, 1
    %s133 = scalar_select %p130, %s131, %s132
    %p136 = pneg %p130
    %p137 = scmp.eq.s32.totalorder %s11, 1
    %p138 = por %p136, %p137
    %p139 = scmp.ne.s32.totalorder %s131, %s134
    %p140 = scmp.eq.s32.totalorder %s11, 0
    %p141 = por %p139, %p140
    %p142 = scmp.ne.s32.totalorder %s131, %s134
    %p143 = scmp.eq.s32.totalorder %s16, 1
    %p144 = por %p142, %p143
    %p145 = scmp.ne.s32.totalorder %s134, %s135
    %p146 = scmp.eq.s32.totalorder %s16, 0
    %p147 = por %p145, %p146
    %p148 = scmp.ne.s32.totalorder %s134, %s135
    %p149 = scmp.eq.s32.totalorder %s17, 1
    %p150 = por %p148, %p149
    %p152 = scmp.ne.s32.totalorder %s135, %s151
    %p153 = scmp.eq.s32.totalorder %s17, 0
    %p154 = por %p152, %p153
    %p155 = scmp.le.s32.totalorder 1, %s11
    %p156 = scmp.lt.s32.totalorder %s11, 3
    %p157 = pnand %p155, %p156
    %p158 = pneg %p157
    // Predicated region
    $region9: #{tpu_custom_call.1} parent=5 // pred_check
      _
    $region10: #{tpu_custom_call.1} parent=5 // pred_check_branch
      %160 = sbr.rel (%p157) target = $region12
    $region11: #{tpu_custom_call.1} parent=5 // pred_region
      %s161 = ssub.s32 %s11, 1
      // Predicated region
      $region13: #{tpu_custom_call.1} parent=11 // pred_check
        %p162 = pneg %p58
      $region14: #{tpu_custom_call.1} parent=11 // pred_check_branch
        %164 = sbr.rel (%p162) target = $region16
      $region15: #{tpu_custom_call.1} parent=11 // pred_region
        _
      $region16: #{tpu_custom_call.1} parent=11 // pred_fallthru
        _
      // Predicated region
      $region17: #{tpu_custom_call.1} parent=11 // pred_check
        %p165 = pneg %p79
      $region18: #{tpu_custom_call.1} parent=11 // pred_check_branch
        %167 = sbr.rel (%p165) target = $region20
      $region19: #{tpu_custom_call.1} parent=11 // pred_region
        _
      $region20: #{tpu_custom_call.1} parent=11 // pred_fallthru
        _
      // Predicated region
      $region21: #{tpu_custom_call.1} parent=11 // pred_check
        %p168 = pneg %p100
      $region22: #{tpu_custom_call.1} parent=11 // pred_check_branch
        %170 = sbr.rel (%p168) target = $region24
      $region23: #{tpu_custom_call.1} parent=11 // pred_region
        _
      $region24: #{tpu_custom_call.1} parent=11 // pred_fallthru
        _
      // Predicated region
      $region25: #{tpu_custom_call.1} parent=11 // pred_check
        %p171 = pneg %p121
      $region26: #{tpu_custom_call.1} parent=11 // pred_check_branch
        %173 = sbr.rel (%p171) target = $region28
      $region27: #{tpu_custom_call.1} parent=11 // pred_region
        _
      $region28: #{tpu_custom_call.1} parent=11 // pred_fallthru
        _
    $region12: #{tpu_custom_call.1} parent=5 // pred_fallthru
      _
    %p174 = scmp.lt.s32.totalorder %s11, 2
    // Predicated region
    $region29: #{tpu_custom_call.1} parent=5 // pred_check
      %p175 = pneg %p174
    $region30: #{tpu_custom_call.1} parent=5 // pred_check_branch
      %177 = sbr.rel (%p175) target = $region32
    $region31: #{tpu_custom_call.1} parent=5 // pred_region
      // Predicated region
      $region33: #{tpu_custom_call.1} parent=31 // pred_check
        %p178 = pneg %p31
      $region34: #{tpu_custom_call.1} parent=31 // pred_check_branch
        %180 = sbr.rel (%p178) target = $region36
      $region35: #{tpu_custom_call.1} parent=31 // pred_region
        %p181 = scmp.lt.s32.totalorder %s11, 1
        %s182 = scalar_select %p181, %s11, 1
        %s183 = smul.addr %s182, 8
        %s184 = scalar_lea.vmem %s0, %s183
      $region36: #{tpu_custom_call.1} parent=31 // pred_fallthru
        _
    $region32: #{tpu_custom_call.1} parent=5 // pred_fallthru
      _
    %p185 = scmp.le.s32.totalorder 1, %s11
    %p186 = scmp.lt.s32.totalorder %s11, 3
    %p187 = pnand %p185, %p186
    %p188 = pneg %p187
    // Predicated region
    $region37: #{tpu_custom_call.1} parent=5 // pred_check
      _
    $region38: #{tpu_custom_call.1} parent=5 // pred_check_branch
      %190 = sbr.rel (%p187) target = $region40
    $region39: #{tpu_custom_call.1} parent=5 // pred_region
      %s191 = ssub.s32 %s11, 1
      %p192 = scmp.lt.s32.totalorder %s16, 1
      %s193 = scalar_select %p192, %s16, 1
      %s194 = smul.addr %s193, 8
      %s195 = scalar_lea.vmem %s0, %s194
      %p196 = pneg %p37
      %p197 = pneg %p34
      %p198 = pneg %p58
      %p199 = pneg %p55
      %p200 = pneg %p79
      %p201 = pneg %p76
      %p202 = pneg %p100
      %p203 = pneg %p97
      %p204 = pneg %p121
      %p205 = pneg %p118
      %p206 = pneg %p147
      %p207 = pneg %p144
      %p208 = scmp.lt.s32.totalorder %s16, 1
      %s209 = scalar_select %p208, %s16, 1
      %s210 = smul.addr %s209, 8
      %s211 = scalar_lea.vmem %s5, %s210
      %p212 = scmp.lt.s32.totalorder %s16, 1
      %s213 = scalar_select %p212, %s16, 1
      %s214 = smul.addr %s213, 8
      %s215 = scalar_lea.vmem %s0, %s214
      %p216 = scmp.lt.s32.totalorder %s16, 1
      %s217 = scalar_select %p216, %s16, 1
      %s218 = smul.addr %s217, 8
      %s219 = scalar_lea.vmem %s5, %s218
      %v220 = vld [vmem:[%s215] sm:$0xff]
      %v221 = vld [vmem:[%s1] sm:$0xff]
      %v222 = vld [vmem:[%s1 + $0x8] sm:$0xff]
      %v223 = vld [vmem:[%s2] sm:$0x1]
      %v225 = vlaneseq
      %v226 = vshrl.u32 %v225, 7
      %v227 = vsub.s32 0, %v226
      %v228 = vrot.slane %v223, %v227
      %vm230 = vcmask 130048
      %v232 = vsel %vm230, %v220, 0
      %234 = vmatprep.subr.mxu0 0.0
      %235 = vmatpush1.msra.mxu0 %v221
      %236 = vmatprep.subr.mxu0 0.0
      %237 = vmatpush1.msra.mxu0 %v222
      %238 = vmatprep.subr.mxu0 0.0
      %239 = vmatpush1.msra.mxu0 0.0
      %240 = vmatprep.subr.mxu0 0.0
      %241 = vmatpush1.msra.mxu0 0.0
      %242 = vmatprep.subr.mxu0 0.0
      %243 = vmatpush1.msra.mxu0 0.0
      %244 = vmatprep.subr.mxu0 0.0
      %245 = vmatpush1.msra.mxu0 0.0
      %246 = vmatprep.subr.mxu0 0.0
      %247 = vmatpush1.msra.mxu0 0.0
      %248 = vmatprep.subr.mxu0 0.0
      %249 = vmatpush1.msra.mxu0 0.0
      %250 = vmatprep.subr.mxu0 0.0
      %251 = vmatpush1.msra.mxu0 0.0
      %252 = vmatprep.subr.mxu0 0.0
      %253 = vmatpush1.msra.mxu0 0.0
      %254 = vmatprep.subr.mxu0 0.0
      %255 = vmatpush1.msra.mxu0 0.0
      %256 = vmatprep.subr.mxu0 0.0
      %257 = vmatpush1.msra.mxu0 0.0
      %258 = vmatprep.subr.mxu0 0.0
      %259 = vmatpush1.msra.mxu0 0.0
      %260 = vmatprep.subr.mxu0 0.0
      %261 = vmatpush1.msra.mxu0 0.0
      %262 = vmatprep.subr.mxu0 0.0
      %263 = vmatpush1.msra.mxu0 0.0
      %264 = vmatprep.subr.mxu0 0.0
      %265 = vmatpush1.msra.mxu0 0.0
      %266 = vmatprep.subr.mxu0 0.0
      %267 = vmatpush1.msra.mxu0 0.0
      %268 = vmatprep.subr.mxu0 0.0
      %269 = vmatpush1.msra.mxu0 0.0
      %270 = vmatprep.subr.mxu0 0.0
      %271 = vmatpush1.msra.mxu0 0.0
      %272 = vmatprep.subr.mxu0 0.0
      %273 = vmatpush1.msra.mxu0 0.0
      %274 = vmatprep.subr.mxu0 0.0
      %275 = vmatpush1.msra.mxu0 0.0
      %276 = vmatprep.subr.mxu0 0.0
      %277 = vmatpush1.msra.mxu0 0.0
      %278 = vmatprep.subr.mxu0 0.0
      %279 = vmatpush1.msra.mxu0 0.0
      %280 = vmatprep.subr.mxu0 0.0
      %281 = vmatpush1.msra.mxu0 0.0
      %282 = vmatprep.subr.mxu0 0.0
      %283 = vmatpush1.msra.mxu0 0.0
      %284 = vmatprep.subr.mxu0 0.0
      %285 = vmatpush1.msra.mxu0 0.0
      %286 = vmatprep.subr.mxu0 0.0
      %287 = vmatpush1.msra.mxu0 0.0
      %288 = vmatprep.subr.mxu0 0.0
      %289 = vmatpush1.msra.mxu0 0.0
      %290 = vmatprep.subr.mxu0 0.0
      %291 = vmatpush1.msra.mxu0 0.0
      %292 = vmatprep.subr.mxu0 0.0
      %293 = vmatpush1.msra.mxu0 0.0
      %294 = vmatprep.subr.mxu0 0.0
      %295 = vmatpush1.msra.mxu0 0.0
      %296 = vmatprep.subr.mxu0 0.0
      %297 = vmatpush1.msra.mxu0 0.0
      %298 = vmatprep.mubr.f32.mxu0 0.0
      %299 = vmatmul.mubr.f32.gmra.mrb[0].mxu0 %v232
      %v300 = vpop.f32.mrb[0].mxu0
      %v301 = vadd.f32 %v228, %v300
      %v302 = vpop.f32.mrb[0].mxu0
      %303 = vdwg.mxu0
      %v304 = vmax.f32 %v301, 0.0
      %v305 = vld [vmem:[%s3] sm:$0xff]
      %v306 = vld [vmem:[%s3 + $0x8] sm:$0xff]
      %v307 = vld [vmem:[%s3 + $0x10] sm:$0xff]
      %v308 = vld [vmem:[%s3 + $0x18] sm:$0xff]
      %v309 = vld [vmem:[%s4] sm:$0x1]
      %v311 = vlaneseq
      %v312 = vshrl.u32 %v311, 7
      %v313 = vsub.s32 0, %v312
      %v314 = vrot.slane %v309, %v313
      %vm316 = vcmask 261120
      %v318 = vsel %vm316, %v304, 0
      %320 = vmatprep.subr.mxu0 0.0
      %321 = vmatpush1.msra.mxu0 %v305
      %322 = vmatprep.subr.mxu0 0.0
      %323 = vmatpush1.msra.mxu0 %v306
      %324 = vmatprep.subr.mxu0 0.0
      %325 = vmatpush1.msra.mxu0 %v307
      %326 = vmatprep.subr.mxu0 0.0
      %327 = vmatpush1.msra.mxu0 %v308
      %328 = vmatprep.subr.mxu0 0.0
      %329 = vmatpush1.msra.mxu0 0.0
      %330 = vmatprep.subr.mxu0 0.0
      %331 = vmatpush1.msra.mxu0 0.0
      %332 = vmatprep.subr.mxu0 0.0
      %333 = vmatpush1.msra.mxu0 0.0
      %334 = vmatprep.subr.mxu0 0.0
      %335 = vmatpush1.msra.mxu0 0.0
      %336 = vmatprep.subr.mxu0 0.0
      %337 = vmatpush1.msra.mxu0 0.0
      %338 = vmatprep.subr.mxu0 0.0
      %339 = vmatpush1.msra.mxu0 0.0
      %340 = vmatprep.subr.mxu0 0.0
      %341 = vmatpush1.msra.mxu0 0.0
      %342 = vmatprep.subr.mxu0 0.0
      %343 = vmatpush1.msra.mxu0 0.0
      %344 = vmatprep.subr.mxu0 0.0
      %345 = vmatpush1.msra.mxu0 0.0
      %346 = vmatprep.subr.mxu0 0.0
      %347 = vmatpush1.msra.mxu0 0.0
      %348 = vmatprep.subr.mxu0 0.0
      %349 = vmatpush1.msra.mxu0 0.0
      %350 = vmatprep.subr.mxu0 0.0
      %351 = vmatpush1.msra.mxu0 0.0
      %352 = vmatprep.subr.mxu0 0.0
      %353 = vmatpush1.msra.mxu0 0.0
      %354 = vmatprep.subr.mxu0 0.0
      %355 = vmatpush1.msra.mxu0 0.0
      %356 = vmatprep.subr.mxu0 0.0
      %357 = vmatpush1.msra.mxu0 0.0
      %358 = vmatprep.subr.mxu0 0.0
      %359 = vmatpush1.msra.mxu0 0.0
      %360 = vmatprep.subr.mxu0 0.0
      %361 = vmatpush1.msra.mxu0 0.0
      %362 = vmatprep.subr.mxu0 0.0
      %363 = vmatpush1.msra.mxu0 0.0
      %364 = vmatprep.subr.mxu0 0.0
      %365 = vmatpush1.msra.mxu0 0.0
      %366 = vmatprep.subr.mxu0 0.0
      %367 = vmatpush1.msra.mxu0 0.0
      %368 = vmatprep.subr.mxu0 0.0
      %369 = vmatpush1.msra.mxu0 0.0
      %370 = vmatprep.subr.mxu0 0.0
      %371 = vmatpush1.msra.mxu0 0.0
      %372 = vmatprep.subr.mxu0 0.0
      %373 = vmatpush1.msra.mxu0 0.0
      %374 = vmatprep.subr.mxu0 0.0
      %375 = vmatpush1.msra.mxu0 0.0
      %376 = vmatprep.subr.mxu0 0.0
      %377 = vmatpush1.msra.mxu0 0.0
      %378 = vmatprep.subr.mxu0 0.0
      %379 = vmatpush1.msra.mxu0 0.0
      %380 = vmatprep.subr.mxu0 0.0
      %381 = vmatpush1.msra.mxu0 0.0
      %382 = vmatprep.subr.mxu0 0.0
      %383 = vmatpush1.msra.mxu0 0.0
      %384 = vmatprep.mubr.f32.mxu0 0.0
      %385 = vmatmul.mubr.f32.gmra.mrb[0].mxu0 %v318
      %v386 = vpop.f32.mrb[0].mxu0
      %v387 = vadd.f32 %v314, %v386
      %v388 = vpop.f32.mrb[0].mxu0
      %389 = vdwg.mxu0
      %v390 = vxor.u32 %v387, 2147483648
      %v391 = vmul.f32 %v390, 1.442695
      %v392 = vpow.pop %v391
      %v393 = vadd.f32 %v392, 1.0
      %v394 = vrcp.pop %v393
      %v395 = vmul.f32 1.0, %v394
      %vm396 = vcmask 64512
      %397 = vst.msk [vmem:[%s219] sm:$0xff] %vm396, %v395
      %p398 = scmp.lt.s32.totalorder %s16, 1
      %s399 = scalar_select %p398, %s16, 1
      %s400 = smul.addr %s399, 8
      %s401 = scalar_lea.vmem %s5, %s400
      // Predicated region
      $region41: #{tpu_custom_call.1} parent=39 // pred_check
        %p402 = pneg %p144
      $region42: #{tpu_custom_call.1} parent=39 // pred_check_branch
        %404 = sbr.rel (%p402) target = $region44
      $region43: #{tpu_custom_call.1} parent=39 // pred_region
        _
      $region44: #{tpu_custom_call.1} parent=39 // pred_fallthru
        _
    $region40: #{tpu_custom_call.1} parent=5 // pred_fallthru
      _
    %p405 = scmp.le.s32.totalorder 2, %s11
    // Predicated region
    $region45: #{tpu_custom_call.1} parent=5 // pred_check
      %p406 = pneg %p405
    $region46: #{tpu_custom_call.1} parent=5 // pred_check_branch
      %408 = sbr.rel (%p406) target = $region48
    $region47: #{tpu_custom_call.1} parent=5 // pred_region
      %s409 = ssub.s32 %s11, 2
      // Predicated region
      $region49: #{tpu_custom_call.1} parent=47 // pred_check
        %p410 = pneg %p150
      $region50: #{tpu_custom_call.1} parent=47 // pred_check_branch
        %412 = sbr.rel (%p410) target = $region52
      $region51: #{tpu_custom_call.1} parent=47 // pred_region
        %p413 = scmp.lt.s32.totalorder %s17, 1
        %s414 = scalar_select %p413, %s17, 1
        %s415 = smul.addr %s414, 8
        %s416 = scalar_lea.vmem %s5, %s415
      $region52: #{tpu_custom_call.1} parent=47 // pred_fallthru
        _
    $region48: #{tpu_custom_call.1} parent=5 // pred_fallthru
      _
  $region6: #{tpu_custom_call.1} parent=0 // loop_footer
    %s15 = sadd.s32 1, %s11
  $region7: #{tpu_custom_call.1} parent=0 // loop_footer_branch
    %10 = sbr.rel target = $region3
  $region8: #{tpu_custom_call.1} parent=0 // loop_exit
    _

// kernel: tpu_custom_call.1
$region0: #{tpu_custom_call.1}
  #allocation0 [shape = 'u32[]', space=smem, size = 0x4, offset = 0x4, fixed_abs, tag = 'smem constant byte address 0x4 - core index']
  #allocation1 [shape = 'u32[144,128]{1,0:T(1,128)}', space=vmem, size = 0x12000, scoped, tag = 'internal scratch']
  %s0 = inlined_call_operand.vmem [shape: f32[16,16], index: 0, kind: input, shape index: {}]
  %s1 = inlined_call_operand.vmem [shape: f32[16,32], index: 1, kind: input, shape index: {}]
  %s2 = inlined_call_operand.vmem [shape: f32[1,32], index: 2, kind: input, shape index: {}]
  %s3 = inlined_call_operand.vmem [shape: f32[32,8], index: 3, kind: input, shape index: {}]
  %s4 = inlined_call_operand.vmem [shape: f32[1,8], index: 4, kind: input, shape index: {}]
  %s5 = inlined_call_operand.vmem [shape: f32[16,8], index: 5, kind: output, shape index: {}]
  %s6 = sld [smem:[#allocation0]]
  $region53: #{tpu_custom_call.1} parent=0
    _
  %s8 = ssub.s32 1, %s6
  %s9 = scalar_select 0, %s8, %s6
  loop: start=0, step=1, limit=4
  $region2: #{tpu_custom_call.1} parent=0 // loop_pre_header
    _
  $region3: #{tpu_custom_call.1} parent=0 // loop_header
    %s11 = sphi 0, %s15
    %p12 = scmp.ge.s32.totalorder %s11, 4
    %s21 = sphi 0, %s23
    %s24 = sphi 0, %s21
    %s25 = sphi 0, %s24
    %s41 = sphi 0, %s25
    %s45 = sphi 0, %s45
    %s47 = sphi 0, %s45
    %s48 = sphi 0, %s47
    %s62 = sphi 0, %s48
    %s66 = sphi 0, %s66
    %s68 = sphi 0, %s66
    %s69 = sphi 0, %s68
    %s83 = sphi 0, %s69
    %s87 = sphi 0, %s87
    %s89 = sphi 0, %s87
    %s90 = sphi 0, %s89
    %s104 = sphi 0, %s90
    %s108 = sphi 0, %s108
    %s110 = sphi 0, %s108
    %s111 = sphi 0, %s110
    %s125 = sphi 0, %s111
    %s131 = sphi 0, %s133
    %s134 = sphi 0, %s131
    %s135 = sphi 0, %s134
    %s151 = sphi 0, %s135
  $region4: #{tpu_custom_call.1} parent=0 // loop_header_branch
    %14 = sbr.rel (%p12) target = $region8
  $region5: #{tpu_custom_call.1} parent=0 // loop_body
    %s16 = ssub.s32 %s11, 1
    %s17 = ssub.s32 %s11, 2
    %s18 = sadd.s32 %s11, 1
    %s19 = ssub.s32 %s11, %s18
    %p20 = scmp.eq.s32.totalorder %s19, 0
    %s22 = sadd.s32 %s21, 1
    %s23 = scalar_select %p20, %s21, %s22
    %p26 = pneg %p20
    %p27 = scmp.eq.s32.totalorder %s11, 1
    %p28 = por %p26, %p27
    %p29 = scmp.ne.s32.totalorder %s21, %s24
    %p30 = scmp.eq.s32.totalorder %s11, 0
    %p31 = por %p29, %p30
    %p32 = scmp.ne.s32.totalorder %s21, %s24
    %p33 = scmp.eq.s32.totalorder %s16, 1
    %p34 = por %p32, %p33
    %p35 = scmp.ne.s32.totalorder %s24, %s25
    %p36 = scmp.eq.s32.totalorder %s16, 0
    %p37 = por %p35, %p36
    %p38 = scmp.ne.s32.totalorder %s24, %s25
    %p39 = scmp.eq.s32.totalorder %s17, 1
    %p40 = por %p38, %p39
    %p42 = scmp.ne.s32.totalorder %s25, %s41
    %p43 = scmp.eq.s32.totalorder %s17, 0
    %p44 = por %p42, %p43
    %s46 = sadd.s32 %s45, 1
    %p49 = scmp.eq.s32.totalorder %s11, 1
    %p50 = scmp.ne.s32.totalorder %s45, %s47
    %p51 = scmp.eq.s32.totalorder %s11, 0
    %p52 = por %p50, %p51
    %p53 = scmp.ne.s32.totalorder %s45, %s47
    %p54 = scmp.eq.s32.totalorder %s16, 1
    %p55 = por %p53, %p54
    %p56 = scmp.ne.s32.totalorder %s47, %s48
    %p57 = scmp.eq.s32.totalorder %s16, 0
    %p58 = por %p56, %p57
    %p59 = scmp.ne.s32.totalorder %s47, %s48
    %p60 = scmp.eq.s32.totalorder %s17, 1
    %p61 = por %p59, %p60
    %p63 = scmp.ne.s32.totalorder %s48, %s62
    %p64 = scmp.eq.s32.totalorder %s17, 0
    %p65 = por %p63, %p64
    %s67 = sadd.s32 %s66, 1
    %p70 = scmp.eq.s32.totalorder %s11, 1
    %p71 = scmp.ne.s32.totalorder %s66, %s68
    %p72 = scmp.eq.s32.totalorder %s11, 0
    %p73 = por %p71, %p72
    %p74 = scmp.ne.s32.totalorder %s66, %s68
    %p75 = scmp.eq.s32.totalorder %s16, 1
    %p76 = por %p74, %p75
    %p77 = scmp.ne.s32.totalorder %s68, %s69
    %p78 = scmp.eq.s32.totalorder %s16, 0
    %p79 = por %p77, %p78
    %p80 = scmp.ne.s32.totalorder %s68, %s69
    %p81 = scmp.eq.s32.totalorder %s17, 1
    %p82 = por %p80, %p81
    %p84 = scmp.ne.s32.totalorder %s69, %s83
    %p85 = scmp.eq.s32.totalorder %s17, 0
    %p86 = por %p84, %p85
    %s88 = sadd.s32 %s87, 1
    %p91 = scmp.eq.s32.totalorder %s11, 1
    %p92 = scmp.ne.s32.totalorder %s87, %s89
    %p93 = scmp.eq.s32.totalorder %s11, 0
    %p94 = por %p92, %p93
    %p95 = scmp.ne.s32.totalorder %s87, %s89
    %p96 = scmp.eq.s32.totalorder %s16, 1
    %p97 = por %p95, %p96
    %p98 = scmp.ne.s32.totalorder %s89, %s90
    %p99 = scmp.eq.s32.totalorder %s16, 0
    %p100 = por %p98, %p99
    %p101 = scmp.ne.s32.totalorder %s89, %s90
    %p102 = scmp.eq.s32.totalorder %s17, 1
    %p103 = por %p101, %p102
    %p105 = scmp.ne.s32.totalorder %s90, %s104
    %p106 = scmp.eq.s32.totalorder %s17, 0
    %p107 = por %p105, %p106
    %s109 = sadd.s32 %s108, 1
    %p112 = scmp.eq.s32.totalorder %s11, 1
    %p113 = scmp.ne.s32.totalorder %s108, %s110
    %p114 = scmp.eq.s32.totalorder %s11, 0
    %p115 = por %p113, %p114
    %p116 = scmp.ne.s32.totalorder %s108, %s110
    %p117 = scmp.eq.s32.totalorder %s16, 1
    %p118 = por %p116, %p117
    %p119 = scmp.ne.s32.totalorder %s110, %s111
    %p120 = scmp.eq.s32.totalorder %s16, 0
    %p121 = por %p119, %p120
    %p122 = scmp.ne.s32.totalorder %s110, %s111
    %p123 = scmp.eq.s32.totalorder %s17, 1
    %p124 = por %p122, %p123
    %p126 = scmp.ne.s32.totalorder %s111, %s125
    %p127 = scmp.eq.s32.totalorder %s17, 0
    %p128 = por %p126, %p127
    %s129 = ssub.s32 %s11, %s18
    %p130 = scmp.eq.s32.totalorder %s129, 0
    %s132 = sadd.s32 %s131, 1
    %s133 = scalar_select %p130, %s131, %s132
    %p136 = pneg %p130
    %p137 = scmp.eq.s32.totalorder %s11, 1
    %p138 = por %p136, %p137
    %p139 = scmp.ne.s32.totalorder %s131, %s134
    %p140 = scmp.eq.s32.totalorder %s11, 0
    %p141 = por %p139, %p140
    %p142 = scmp.ne.s32.totalorder %s131, %s134
    %p143 = scmp.eq.s32.totalorder %s16, 1
    %p144 = por %p142, %p143
    %p145 = scmp.ne.s32.totalorder %s134, %s135
    %p146 = scmp.eq.s32.totalorder %s16, 0
    %p147 = por %p145, %p146
    %p148 = scmp.ne.s32.totalorder %s134, %s135
    %p149 = scmp.eq.s32.totalorder %s17, 1
    %p150 = por %p148, %p149
    %p152 = scmp.ne.s32.totalorder %s135, %s151
    %p153 = scmp.eq.s32.totalorder %s17, 0
    %p154 = por %p152, %p153
    %p155 = scmp.le.s32.totalorder 1, %s11
    %p156 = scmp.lt.s32.totalorder %s11, 3
    %p157 = pnand %p155, %p156
    %p158 = pneg %p157
    // Predicated region
    $region9: #{tpu_custom_call.1} parent=5 // pred_check
      _
    $region10: #{tpu_custom_call.1} parent=5 // pred_check_branch
      %160 = sbr.rel (%p157) target = $region12
    $region11: #{tpu_custom_call.1} parent=5 // pred_region
      %s161 = ssub.s32 %s11, 1
      // Predicated region
      $region13: #{tpu_custom_call.1} parent=11 // pred_check
        %p162 = pneg %p58
      $region14: #{tpu_custom_call.1} parent=11 // pred_check_branch
        %164 = sbr.rel (%p162) target = $region16
      $region15: #{tpu_custom_call.1} parent=11 // pred_region
        _
      $region16: #{tpu_custom_call.1} parent=11 // pred_fallthru
        _
      // Predicated region
      $region17: #{tpu_custom_call.1} parent=11 // pred_check
        %p165 = pneg %p79
      $region18: #{tpu_custom_call.1} parent=11 // pred_check_branch
        %167 = sbr.rel (%p165) target = $region20
      $region19: #{tpu_custom_call.1} parent=11 // pred_region
        _
      $region20: #{tpu_custom_call.1} parent=11 // pred_fallthru
        _
      // Predicated region
      $region21: #{tpu_custom_call.1} parent=11 // pred_check
        %p168 = pneg %p100
      $region22: #{tpu_custom_call.1} parent=11 // pred_check_branch
        %170 = sbr.rel (%p168) target = $region24
      $region23: #{tpu_custom_call.1} parent=11 // pred_region
        _
      $region24: #{tpu_custom_call.1} parent=11 // pred_fallthru
        _
      // Predicated region
      $region25: #{tpu_custom_call.1} parent=11 // pred_check
        %p171 = pneg %p121
      $region26: #{tpu_custom_call.1} parent=11 // pred_check_branch
        %173 = sbr.rel (%p171) target = $region28
      $region27: #{tpu_custom_call.1} parent=11 // pred_region
        _
      $region28: #{tpu_custom_call.1} parent=11 // pred_fallthru
        _
    $region12: #{tpu_custom_call.1} parent=5 // pred_fallthru
      _
    %p174 = scmp.lt.s32.totalorder %s11, 2
    // Predicated region
    $region29: #{tpu_custom_call.1} parent=5 // pred_check
      %p175 = pneg %p174
    $region30: #{tpu_custom_call.1} parent=5 // pred_check_branch
      %177 = sbr.rel (%p175) target = $region32
    $region31: #{tpu_custom_call.1} parent=5 // pred_region
      // Predicated region
      $region33: #{tpu_custom_call.1} parent=31 // pred_check
        %p178 = pneg %p31
      $region34: #{tpu_custom_call.1} parent=31 // pred_check_branch
        %180 = sbr.rel (%p178) target = $region36
      $region35: #{tpu_custom_call.1} parent=31 // pred_region
        %p181 = scmp.lt.s32.totalorder %s11, 1
        %s182 = scalar_select %p181, %s11, 1
        %s183 = smul.addr %s182, 8
        %s184 = scalar_lea.vmem %s0, %s183
      $region36: #{tpu_custom_call.1} parent=31 // pred_fallthru
        _
    $region32: #{tpu_custom_call.1} parent=5 // pred_fallthru
      _
    %p185 = scmp.le.s32.totalorder 1, %s11
    %p186 = scmp.lt.s32.totalorder %s11, 3
    %p187 = pnand %p185, %p186
    %p188 = pneg %p187
    // Predicated region
    $region37: #{tpu_custom_call.1} parent=5 // pred_check
      _
    $region38: #{tpu_custom_call.1} parent=5 // pred_check_branch
      %190 = sbr.rel (%p187) target = $region40
    $region39: #{tpu_custom_call.1} parent=5 // pred_region
      %s191 = ssub.s32 %s11, 1
      %p192 = scmp.lt.s32.totalorder %s16, 1
      %s193 = scalar_select %p192, %s16, 1
      %s194 = smul.addr %s193, 8
      %s195 = scalar_lea.vmem %s0, %s194
      %p196 = pneg %p37
      %p197 = pneg %p34
      %p198 = pneg %p58
      %p199 = pneg %p55
      %p200 = pneg %p79
      %p201 = pneg %p76
      %p202 = pneg %p100
      %p203 = pneg %p97
      %p204 = pneg %p121
      %p205 = pneg %p118
      %p206 = pneg %p147
      %p207 = pneg %p144
      %p208 = scmp.lt.s32.totalorder %s16, 1
      %s209 = scalar_select %p208, %s16, 1
      %s210 = smul.addr %s209, 8
      %s211 = scalar_lea.vmem %s5, %s210
      %p212 = scmp.lt.s32.totalorder %s16, 1
      %s213 = scalar_select %p212, %s16, 1
      %s214 = smul.addr %s213, 8
      %s215 = scalar_lea.vmem %s0, %s214
      %p216 = scmp.lt.s32.totalorder %s16, 1
      %s217 = scalar_select %p216, %s16, 1
      %s218 = smul.addr %s217, 8
      %s219 = scalar_lea.vmem %s5, %s218
      %v220 = vld [vmem:[%s215] sm:$0xff]
      %v221 = vld [vmem:[%s1] sm:$0xff]
      %v222 = vld [vmem:[%s1 + $0x8] sm:$0xff]
      %v223 = vld [vmem:[%s2] sm:$0x1]
      %v225 = vlaneseq
      %v226 = vshrl.u32 %v225, 7
      %v227 = vsub.s32 0, %v226
      %v228 = vrot.slane %v223, %v227
      %vm230 = vcmask 130048
      %v232 = vsel %vm230, %v220, 0
      %234 = vmatprep.subr.mxu0 0.0
      %235 = vmatpush1.msra.mxu0 %v221
      %236 = vmatprep.subr.mxu0 0.0
      %237 = vmatpush1.msra.mxu0 %v222
      %238 = vmatprep.subr.mxu0 0.0
      %239 = vmatpush1.msra.mxu0 0.0
      %240 = vmatprep.subr.mxu0 0.0
      %241 = vmatpush1.msra.mxu0 0.0
      %242 = vmatprep.subr.mxu0 0.0
      %243 = vmatpush1.msra.mxu0 0.0
      %244 = vmatprep.subr.mxu0 0.0
      %245 = vmatpush1.msra.mxu0 0.0
      %246 = vmatprep.subr.mxu0 0.0
      %247 = vmatpush1.msra.mxu0 0.0
      %248 = vmatprep.subr.mxu0 0.0
      %249 = vmatpush1.msra.mxu0 0.0
      %250 = vmatprep.subr.mxu0 0.0
      %251 = vmatpush1.msra.mxu0 0.0
      %252 = vmatprep.subr.mxu0 0.0
      %253 = vmatpush1.msra.mxu0 0.0
      %254 = vmatprep.subr.mxu0 0.0
      %255 = vmatpush1.msra.mxu0 0.0
      %256 = vmatprep.subr.mxu0 0.0
      %257 = vmatpush1.msra.mxu0 0.0
      %258 = vmatprep.subr.mxu0 0.0
      %259 = vmatpush1.msra.mxu0 0.0
      %260 = vmatprep.subr.mxu0 0.0
      %261 = vmatpush1.msra.mxu0 0.0
      %262 = vmatprep.subr.mxu0 0.0
      %263 = vmatpush1.msra.mxu0 0.0
      %264 = vmatprep.subr.mxu0 0.0
      %265 = vmatpush1.msra.mxu0 0.0
      %266 = vmatprep.subr.mxu0 0.0
      %267 = vmatpush1.msra.mxu0 0.0
      %268 = vmatprep.subr.mxu0 0.0
      %269 = vmatpush1.msra.mxu0 0.0
      %270 = vmatprep.subr.mxu0 0.0
      %271 = vmatpush1.msra.mxu0 0.0
      %272 = vmatprep.subr.mxu0 0.0
      %273 = vmatpush1.msra.mxu0 0.0
      %274 = vmatprep.subr.mxu0 0.0
      %275 = vmatpush1.msra.mxu0 0.0
      %276 = vmatprep.subr.mxu0 0.0
      %277 = vmatpush1.msra.mxu0 0.0
      %278 = vmatprep.subr.mxu0 0.0
      %279 = vmatpush1.msra.mxu0 0.0
      %280 = vmatprep.subr.mxu0 0.0
      %281 = vmatpush1.msra.mxu0 0.0
      %282 = vmatprep.subr.mxu0 0.0
      %283 = vmatpush1.msra.mxu0 0.0
      %284 = vmatprep.subr.mxu0 0.0
      %285 = vmatpush1.msra.mxu0 0.0
      %286 = vmatprep.subr.mxu0 0.0
      %287 = vmatpush1.msra.mxu0 0.0
      %288 = vmatprep.subr.mxu0 0.0
      %289 = vmatpush1.msra.mxu0 0.0
      %290 = vmatprep.subr.mxu0 0.0
      %291 = vmatpush1.msra.mxu0 0.0
      %292 = vmatprep.subr.mxu0 0.0
      %293 = vmatpush1.msra.mxu0 0.0
      %294 = vmatprep.subr.mxu0 0.0
      %295 = vmatpush1.msra.mxu0 0.0
      %296 = vmatprep.subr.mxu0 0.0
      %297 = vmatpush1.msra.mxu0 0.0
      %298 = vmatprep.mubr.f32.mxu0 0.0
      %299 = vmatmul.mubr.f32.gmra.mrb[0].mxu0 %v232
      %v300 = vpop.f32.mrb[0].mxu0
      %v301 = vadd.f32 %v228, %v300
      %v302 = vpop.f32.mrb[0].mxu0
      %303 = vdwg.mxu0
      %v304 = vmax.f32 %v301, 0.0
      %v305 = vld [vmem:[%s3] sm:$0xff]
      %v306 = vld [vmem:[%s3 + $0x8] sm:$0xff]
      %v307 = vld [vmem:[%s3 + $0x10] sm:$0xff]
      %v308 = vld [vmem:[%s3 + $0x18] sm:$0xff]
      %v309 = vld [vmem:[%s4] sm:$0x1]
      %v311 = vlaneseq
      %v312 = vshrl.u32 %v311, 7
      %v313 = vsub.s32 0, %v312
      %v314 = vrot.slane %v309, %v313
      %vm316 = vcmask 261120
      %v318 = vsel %vm316, %v304, 0
      %320 = vmatprep.subr.mxu0 0.0
      %321 = vmatpush1.msra.mxu0 %v305
      %322 = vmatprep.subr.mxu0 0.0
      %323 = vmatpush1.msra.mxu0 %v306
      %324 = vmatprep.subr.mxu0 0.0
      %325 = vmatpush1.msra.mxu0 %v307
      %326 = vmatprep.subr.mxu0 0.0
      %327 = vmatpush1.msra.mxu0 %v308
      %328 = vmatprep.subr.mxu0 0.0
      %329 = vmatpush1.msra.mxu0 0.0
      %330 = vmatprep.subr.mxu0 0.0
      %331 = vmatpush1.msra.mxu0 0.0
      %332 = vmatprep.subr.mxu0 0.0
      %333 = vmatpush1.msra.mxu0 0.0
      %334 = vmatprep.subr.mxu0 0.0
      %335 = vmatpush1.msra.mxu0 0.0
      %336 = vmatprep.subr.mxu0 0.0
      %337 = vmatpush1.msra.mxu0 0.0
      %338 = vmatprep.subr.mxu0 0.0
      %339 = vmatpush1.msra.mxu0 0.0
      %340 = vmatprep.subr.mxu0 0.0
      %341 = vmatpush1.msra.mxu0 0.0
      %342 = vmatprep.subr.mxu0 0.0
      %343 = vmatpush1.msra.mxu0 0.0
      %344 = vmatprep.subr.mxu0 0.0
      %345 = vmatpush1.msra.mxu0 0.0
      %346 = vmatprep.subr.mxu0 0.0
      %347 = vmatpush1.msra.mxu0 0.0
      %348 = vmatprep.subr.mxu0 0.0
      %349 = vmatpush1.msra.mxu0 0.0
      %350 = vmatprep.subr.mxu0 0.0
      %351 = vmatpush1.msra.mxu0 0.0
      %352 = vmatprep.subr.mxu0 0.0
      %353 = vmatpush1.msra.mxu0 0.0
      %354 = vmatprep.subr.mxu0 0.0
      %355 = vmatpush1.msra.mxu0 0.0
      %356 = vmatprep.subr.mxu0 0.0
      %357 = vmatpush1.msra.mxu0 0.0
      %358 = vmatprep.subr.mxu0 0.0
      %359 = vmatpush1.msra.mxu0 0.0
      %360 = vmatprep.subr.mxu0 0.0
      %361 = vmatpush1.msra.mxu0 0.0
      %362 = vmatprep.subr.mxu0 0.0
      %363 = vmatpush1.msra.mxu0 0.0
      %364 = vmatprep.subr.mxu0 0.0
      %365 = vmatpush1.msra.mxu0 0.0
      %366 = vmatprep.subr.mxu0 0.0
      %367 = vmatpush1.msra.mxu0 0.0
      %368 = vmatprep.subr.mxu0 0.0
      %369 = vmatpush1.msra.mxu0 0.0
      %370 = vmatprep.subr.mxu0 0.0
      %371 = vmatpush1.msra.mxu0 0.0
      %372 = vmatprep.subr.mxu0 0.0
      %373 = vmatpush1.msra.mxu0 0.0
      %374 = vmatprep.subr.mxu0 0.0
      %375 = vmatpush1.msra.mxu0 0.0
      %376 = vmatprep.subr.mxu0 0.0
      %377 = vmatpush1.msra.mxu0 0.0
      %378 = vmatprep.subr.mxu0 0.0
      %379 = vmatpush1.msra.mxu0 0.0
      %380 = vmatprep.subr.mxu0 0.0
      %381 = vmatpush1.msra.mxu0 0.0
      %382 = vmatprep.subr.mxu0 0.0
      %383 = vmatpush1.msra.mxu0 0.0
      %384 = vmatprep.mubr.f32.mxu0 0.0
      %385 = vmatmul.mubr.f32.gmra.mrb[0].mxu0 %v318
      %v386 = vpop.f32.mrb[0].mxu0
      %v387 = vadd.f32 %v314, %v386
      %v388 = vpop.f32.mrb[0].mxu0
      %389 = vdwg.mxu0
      %v390 = vxor.u32 %v387, 2147483648
      %v391 = vmul.f32 %v390, 1.442695
      %v392 = vpow.pop %v391
      %v393 = vadd.f32 %v392, 1.0
      %v394 = vrcp.pop %v393
      %v395 = vmul.f32 1.0, %v394
      %vm396 = vcmask 64512
      %397 = vst.msk [vmem:[%s219] sm:$0xff] %vm396, %v395
      %p398 = scmp.lt.s32.totalorder %s16, 1
      %s399 = scalar_select %p398, %s16, 1
      %s400 = smul.addr %s399, 8
      %s401 = scalar_lea.vmem %s5, %s400
      // Predicated region
      $region41: #{tpu_custom_call.1} parent=39 // pred_check
        %p402 = pneg %p144
      $region42: #{tpu_custom_call.1} parent=39 // pred_check_branch
        %404 = sbr.rel (%p402) target = $region44
      $region43: #{tpu_custom_call.1} parent=39 // pred_region
        _
      $region44: #{tpu_custom_call.1} parent=39 // pred_fallthru
        _
    $region40: #{tpu_custom_call.1} parent=5 // pred_fallthru
      _
    %p405 = scmp.le.s32.totalorder 2, %s11
    // Predicated region
    $region45: #{tpu_custom_call.1} parent=5 // pred_check
      %p406 = pneg %p405
    $region46: #{tpu_custom_call.1} parent=5 // pred_check_branch
      %408 = sbr.rel (%p406) target = $region48
    $region47: #{tpu_custom_call.1} parent=5 // pred_region
      %s409 = ssub.s32 %s11, 2
      // Predicated region
      $region49: #{tpu_custom_call.1} parent=47 // pred_check
        %p410 = pneg %p150
      $region50: #{tpu_custom_call.1} parent=47 // pred_check_branch
        %412 = sbr.rel (%p410) target = $region52
      $region51: #{tpu_custom_call.1} parent=47 // pred_region
        %p413 = scmp.lt.s32.totalorder %s17, 1
        %s414 = scalar_select %p413, %s17, 1
        %s415 = smul.addr %s414, 8
        %s416 = scalar_lea.vmem %s5, %s415
      $region52: #{tpu_custom_call.1} parent=47 // pred_fallthru
        _
    $region48: #{tpu_custom_call.1} parent=5 // pred_fallthru
      _
  $region6: #{tpu_custom_call.1} parent=0 // loop_footer
    %s15 = sadd.s32 1, %s11
  $region7: #{tpu_custom_call.1} parent=0 // loop_footer_branch
    %10 = sbr.rel target = $region3
  $region8: #{tpu_custom_call.1} parent=0 // loop_exit
    _

</llo_original>
